<compile_context>
chip_gen: v6e
topology: v6e:2x2x1
jax: 0.10.0
libtpu: 0.0.40
codegen_flags: <defaults>
</compile_context>

<pallas_src>
from functools import partial

import jax
import jax.numpy as jnp
import numpy as np
from jax.experimental import pallas as pl
from jax.experimental.pallas import tpu as pltpu


# ------------------------------------------------------------------
# small helper: largest tile <= target that evenly divides dim
# ------------------------------------------------------------------
def _pick_tile(dim, target, align):
    if dim <= target:
        return dim
    t = (target // align) * align
    while t >= align:
        if dim % t == 0:
            return t
        t -= align
    return dim  # fall back to the full dimension


# ------------------------------------------------------------------
# Pallas kernel 1: tiled y = x @ W   (W pre-transposed to (in, out) at prep time)
# ------------------------------------------------------------------
def _linear_kernel(x_ref, w_ref, o_ref, acc_ref):
    @pl.when(pl.program_id(2) == 0)
    def _init():
        acc_ref[...] = jnp.zeros(acc_ref.shape, acc_ref.dtype)

    acc_ref[...] += jnp.dot(x_ref[...], w_ref[...],
                            preferred_element_type=jnp.float32)

    @pl.when(pl.program_id(2) == pl.num_programs(2) - 1)
    def _store():
        o_ref[...] = acc_ref[...].astype(o_ref.dtype)


def pallas_linear(x2d, w_t, out_dtype, *, tm=512, tn=1024, tk=512):
    """x2d: (M, K) bf16, w_t: (K, N) bf16 (pre-transposed) -> (M, N) = x2d @ w_t."""
    M, K = x2d.shape
    N = w_t.shape[1]
    tm = _pick_tile(M, tm, 8)
    tn = _pick_tile(N, tn, 128)
    tk = _pick_tile(K, tk, 128)
    grid = (M // tm, N // tn, K // tk)
    return pl.pallas_call(
        _linear_kernel,
        out_shape=jax.ShapeDtypeStruct((M, N), out_dtype),
        grid=grid,
        in_specs=[
            pl.BlockSpec((tm, tk), lambda i, j, k: (i, k)),
            pl.BlockSpec((tk, tn), lambda i, j, k: (k, j)),
        ],
        out_specs=pl.BlockSpec((tm, tn), lambda i, j, k: (i, j)),
        scratch_shapes=[pltpu.VMEM((tm, tn), jnp.float32)],
        compiler_params=pltpu.CompilerParams(
            dimension_semantics=("parallel", "parallel", "arbitrary")),
    )(x2d, w_t)


# ------------------------------------------------------------------
# Pallas kernel 2: RoPE pre-pass (rotate-half) on the (B, S, H*Dh) projection layout
# ------------------------------------------------------------------
def _rope_kernel(x_ref, cos_ref, sin_ref, o_ref, *, half):
    # columns within each head are already [re-half | im-half] (weight-row permutation),
    # so RoPE is x * [cos|cos] + roll(x, Dh/2) * [-sin|sin]  (XLU roll, f32 math).
    x = x_ref[0].astype(jnp.float32)                                  # (ts, Dh)
    rot = x * cos_ref[...] + pltpu.roll(x, shift=half, axis=1) * sin_ref[...]
    o_ref[0] = rot.astype(o_ref.dtype)


def pallas_rope(x, cos2, sin2, *, head_dim, ts=512):
    """x: (B, S, H*Dh) bf16; cos2/sin2: (S, Dh) f32. Returns rotated x (same shape/dtype)."""
    B, S, N = x.shape
    H = N // head_dim
    ts = _pick_tile(S, ts, 8)
    grid = (B, S // ts, H)
    return pl.pallas_call(
        partial(_rope_kernel, half=head_dim // 2),
        out_shape=jax.ShapeDtypeStruct(x.shape, x.dtype),
        grid=grid,
        in_specs=[
            pl.BlockSpec((1, ts, head_dim), lambda b, si, h: (b, si, h)),
            pl.BlockSpec((ts, head_dim), lambda b, si, h: (si, 0)),
            pl.BlockSpec((ts, head_dim), lambda b, si, h: (si, 0)),
        ],
        out_specs=pl.BlockSpec((1, ts, head_dim), lambda b, si, h: (b, si, h)),
        compiler_params=pltpu.CompilerParams(
            dimension_semantics=("parallel", "parallel", "parallel")),
    )(x, cos2, sin2)


# ------------------------------------------------------------------
# Pallas kernel 3: flash attention, GQA folded into the q block, in-kernel causal mask
# ------------------------------------------------------------------
def _flash_attn_kernel(q_ref, k_ref, v_ref, *rest, n_rep, head_dim, tq, tkv,
                       causal, has_mask):
    if has_mask:
        mask_ref, o_ref, m_sc, l_sc, acc_sc = rest
    else:
        o_ref, m_sc, l_sc, acc_sc = rest

    qi = pl.program_id(2)
    ki = pl.program_id(3)

    @pl.when(ki == 0)
    def _init():
        m_sc[...] = jnp.full(m_sc.shape, -1e30, m_sc.dtype)
        l_sc[...] = jnp.zeros(l_sc.shape, l_sc.dtype)
        acc_sc[...] = jnp.zeros(acc_sc.shape, acc_sc.dtype)

    def _compute_body():
        k = k_ref[0]                                         # (tkv, Dh) bf16, pre-rotated
        v = v_ref[0]                                         # (tkv, Dh) bf16

        if causal:
            # in-kernel causal mask: no (S,S) mask stream from HBM
            rows = qi * tq + jax.lax.broadcasted_iota(jnp.int32, (tq, tkv), 0)
            cols = ki * tkv + jax.lax.broadcasted_iota(jnp.int32, (tq, tkv), 1)
            keep = cols <= rows
        if has_mask:
            add_mask = mask_ref[...].astype(jnp.float32)

        for r in range(n_rep):                               # unrolled GQA group
            # pre-rotated, pre-scaled (1/sqrt(Dh) folded into wq) query slice
            q_r = q_ref[0, :, r * head_dim:(r + 1) * head_dim]          # (tq, Dh) bf16
            s = jax.lax.dot_general(q_r, k, (((1,), (1,)), ((), ())),
                                    preferred_element_type=jnp.float32)  # (tq, tkv)
            if has_mask:
                s = s + add_mask
            if causal:
                s = jnp.where(keep, s, -1e30)

            m_prev = m_sc[r]
            m_new = jnp.maximum(m_prev, jnp.max(s, axis=-1, keepdims=True))
            alpha = jnp.exp(m_prev - m_new)
            p = jnp.exp(s - m_new)
            l_sc[r] = alpha * l_sc[r] + jnp.sum(p, axis=-1, keepdims=True)
            acc_sc[r] = alpha * acc_sc[r] + jax.lax.dot_general(
                p.astype(jnp.bfloat16), v, (((1,), (0,)), ((), ())),
                preferred_element_type=jnp.float32)
            m_sc[r] = m_new

    if causal:
        # skip kv blocks entirely above the diagonal (roughly halves MXU/EUP/VPU work)
        pl.when(ki * tkv < (qi + 1) * tq)(_compute_body)
    else:
        _compute_body()

    @pl.when(ki == pl.num_programs(3) - 1)
    def _finalize():
        # TODO(synk): with an arbitrary (non-causal) user mask a fully-masked query row
        # leaves l == 0 -> inf here; the causal path can never hit this.
        for r in range(n_rep):
            inv_l = pl.reciprocal(l_sc[r], approx=True)      # EUP, free VLIW slot
            o_ref[0, :, r * head_dim:(r + 1) * head_dim] = (
                acc_sc[r] * inv_l).astype(o_ref.dtype)


def pallas_flash_attention(q, k, v, *, n_heads, n_kv_heads, head_dim,
                           mask=None, causal=True, tq=512, tkv=1024):
    """q: (B,S,Hq*Dh) bf16 (pre-RoPE'd, pre-scaled); k,v: (B,S,Hkv*Dh) bf16 (k pre-RoPE'd).
       mask: optional (S,S) additive mask (fallback path).  Returns (B,S,Hq*Dh) bf16."""
    B, S, _ = q.shape
    n_rep = n_heads // n_kv_heads
    tq = _pick_tile(S, tq, 8)
    tkv = _pick_tile(S, tkv, 8)
    grid = (B, n_kv_heads, S // tq, S // tkv)

    if causal:
        # clamp K/V block index above the diagonal so the (skipped) blocks re-use the
        # previous tile -> Pallas elides the DMA; compute there is skipped anyway.
        def kv_map(b, h, qi, ki):
            last_valid = ((qi + 1) * tq - 1) // tkv
            return (b, jnp.minimum(ki, last_valid), h)
    else:
        def kv_map(b, h, qi, ki):
            return (b, ki, h)

    in_specs = [
        # whole GQA group of query heads in one lane-dense (tq, n_rep*Dh) tile
        pl.BlockSpec((1, tq, n_rep * head_dim), lambda b, h, qi, ki: (b, qi, h)),
        pl.BlockSpec((1, tkv, head_dim), kv_map),
        pl.BlockSpec((1, tkv, head_dim), kv_map),
    ]
    args = [q, k, v]
    has_mask = mask is not None
    if has_mask:
        in_specs.append(pl.BlockSpec((tq, tkv), lambda b, h, qi, ki: (qi, ki)))
        args.append(mask.astype(jnp.bfloat16))               # halve the mask HBM stream

    kern = partial(_flash_attn_kernel, n_rep=n_rep, head_dim=head_dim,
                   tq=tq, tkv=tkv, causal=causal, has_mask=has_mask)
    return pl.pallas_call(
        kern,
        out_shape=jax.ShapeDtypeStruct((B, S, n_heads * head_dim), jnp.bfloat16),
        grid=grid,
        in_specs=in_specs,
        out_specs=pl.BlockSpec((1, tq, n_rep * head_dim),
                               lambda b, h, qi, ki: (b, qi, h)),
        scratch_shapes=[
            pltpu.VMEM((n_rep, tq, 1), jnp.float32),         # m (running max)
            pltpu.VMEM((n_rep, tq, 1), jnp.float32),         # l (running denom)
            pltpu.VMEM((n_rep, tq, head_dim), jnp.float32),  # acc
        ],
        compiler_params=pltpu.CompilerParams(
            dimension_semantics=("parallel", "parallel", "parallel", "arbitrary")),
    )(*args)


# ------------------------------------------------------------------
# Parameter / buffer setup
# ------------------------------------------------------------------
def precompute_freqs_cis_real(dim, end, theta):
    freqs = 1.0 / theta ** (np.arange(0, dim, 2)[: dim // 2].astype(np.float32) / dim)
    t = np.arange(end, dtype=np.float32)
    freqs = np.outer(t, freqs)
    # PyTorch casts to float16; mimic that quantization then promote back to f32.
    cos_vals = np.cos(freqs).astype(np.float16).astype(np.float32)
    sin_vals = np.sin(freqs).astype(np.float16).astype(np.float32)
    return jnp.asarray(cos_vals), jnp.asarray(sin_vals)


def init_params(key, dim, n_heads, n_kv_heads, max_seq_len, rope_theta):
    head_dim = dim // n_heads
    k1, k2, k3, k4 = jax.random.split(key, 4)
    params = {
        "wq": 0.02 * jax.random.normal(k1, (n_heads * head_dim, dim), jnp.float32),
        "wk": 0.02 * jax.random.normal(k2, (n_kv_heads * head_dim, dim), jnp.float32),
        "wv": 0.02 * jax.random.normal(k3, (n_kv_heads * head_dim, dim), jnp.float32),
        "wo": 0.02 * jax.random.normal(k4, (dim, n_heads * head_dim), jnp.float32),
    }
    cos, sin = precompute_freqs_cis_real(head_dim, max_seq_len * 2, rope_theta)
    params["cos"] = cos
    params["sin"] = sin
    return params


def _deinterleave_row_perm(n_heads, head_dim):
    within = np.concatenate([np.arange(0, head_dim, 2), np.arange(1, head_dim, 2)])
    return (np.arange(n_heads)[:, None] * head_dim + within[None, :]).reshape(-1)


def prepare_params(params, *, n_heads, n_kv_heads):
    """One-time prep: permute wq/wk rows so each head's projection emits [even | odd]
    (= [re | im]) halves contiguously, fold 1/sqrt(Dh) into wq, pre-transpose all
    weights to (in, out), cast to bf16, and build the duplicated cos/sin tables."""
    head_dim = params["wq"].shape[0] // n_heads
    scale = 1.0 / (head_dim ** 0.5)
    pq = _deinterleave_row_perm(n_heads, head_dim)
    pk = _deinterleave_row_perm(n_kv_heads, head_dim)
    cos, sin = params["cos"], params["sin"]
    return {
        "wq_t": (params["wq"][pq] * scale).T.astype(jnp.bfloat16),   # (D, Hq*Dh)
        "wk_t": params["wk"][pk].T.astype(jnp.bfloat16),             # (D, Hkv*Dh)
        "wv_t": params["wv"].T.astype(jnp.bfloat16),                 # (D, Hkv*Dh)
        "wo_t": params["wo"].T.astype(jnp.bfloat16),                 # (Hq*Dh, D)
        "cos2": jnp.concatenate([cos, cos], axis=-1),                # (end, Dh) f32
        "sin2": jnp.concatenate([-sin, sin], axis=-1),               # (end, Dh) f32
    }


# ------------------------------------------------------------------
# Full forward (Pallas kernels + free reshapes only; no transposes between kernels)
# ------------------------------------------------------------------
def trained_attention_forward(x, mask, prep, *, n_heads, n_kv_heads, causal=True):
    B, S, D = x.shape
    head_dim = D // n_heads

    x2d = x.reshape(B * S, D).astype(jnp.bfloat16)   # bf16 MXU operands, once
    xq = pallas_linear(x2d, prep["wq_t"], jnp.bfloat16).reshape(B, S, n_heads * head_dim)
    xk = pallas_linear(x2d, prep["wk_t"], jnp.bfloat16).reshape(B, S, n_kv_heads * head_dim)
    xv = pallas_linear(x2d, prep["wv_t"], jnp.bfloat16).reshape(B, S, n_kv_heads * head_dim)

    # RoPE hoisted out of the attention loop: one cheap elementwise pre-pass each.
    cos2 = prep["cos2"][:S]
    sin2 = prep["sin2"][:S]
    xq = pallas_rope(xq, cos2, sin2, head_dim=head_dim)
    xk = pallas_rope(xk, cos2, sin2, head_dim=head_dim)

    attn = pallas_flash_attention(xq, xk, xv, n_heads=n_heads, n_kv_heads=n_kv_heads,
                                  head_dim=head_dim, mask=mask, causal=causal)
    out = pallas_linear(attn.reshape(B * S, n_heads * head_dim),
                        prep["wo_t"], jnp.float32)
    return out.reshape(B, S, D)


# ------------------------------------------------------------------
# Pure-JAX f32 reference mirroring the PyTorch module (for correctness check)
# ------------------------------------------------------------------
def reference_forward(x, mask, params, *, n_heads, n_kv_heads):
    B, S, D = x.shape
    head_dim = D // n_heads
    n_rep = n_heads // n_kv_heads

    def rope(t):  # t: (B, S, H, Dh)
        cos = params["cos"][:S].reshape(1, S, 1, head_dim // 2)
        sin = params["sin"][:S].reshape(1, S, 1, head_dim // 2)
        tr, ti = t[..., 0::2], t[..., 1::2]
        return jnp.concatenate([tr * cos - ti * sin, tr * sin + ti * cos], axis=-1)

    xq = (x @ params["wq"].T).reshape(B, S, n_heads, head_dim)
    xk = (x @ params["wk"].T).reshape(B, S, n_kv_heads, head_dim)
    xv = (x @ params["wv"].T).reshape(B, S, n_kv_heads, head_dim)
    xq, xk = rope(xq), rope(xk)
    keys = jnp.repeat(xk, n_rep, axis=2)
    values = jnp.repeat(xv, n_rep, axis=2)

    q = jnp.transpose(xq, (0, 2, 1, 3))
    k = jnp.transpose(keys, (0, 2, 1, 3))
    v = jnp.transpose(values, (0, 2, 1, 3))
    scores = jnp.einsum("bhqd,bhkd->bhqk", q, k,
                        precision=jax.lax.Precision.HIGHEST) / (head_dim ** 0.5)
    scores = scores + mask[None, None, :, :]
    p = jax.nn.softmax(scores, axis=-1)
    o = jnp.einsum("bhqk,bhkd->bhqd", p, v, precision=jax.lax.Precision.HIGHEST)
    o = jnp.transpose(o, (0, 2, 1, 3)).reshape(B, S, n_heads * head_dim)
    return o @ params["wo"].T


# ------------------------------------------------------------------
if __name__ == "__main__":
    # Small but layout-realistic configuration: head_dim = 128 (lane/MXU friendly).
    B, S = 2, 8
    dim, n_heads, n_kv_heads = 512, 4, 2
    max_seq_len, rope_theta = 16, 500000.0

    key = jax.random.PRNGKey(0)
    kx, kp = jax.random.split(key)
    x = jax.random.normal(kx, (B, S, dim), jnp.float32)
    params = init_params(kp, dim, n_heads, n_kv_heads, max_seq_len, rope_theta)
    prep = prepare_params(params, n_heads=n_heads, n_kv_heads=n_kv_heads)

    # additive causal mask (module argument; SDPA adds it)
    row = jnp.arange(S)[:, None]
    col = jnp.arange(S)[None, :]
    mask = jnp.where(col <= row, 0.0, -1e9).astype(jnp.float32)

    ref = reference_forward(x, mask, params, n_heads=n_heads, n_kv_heads=n_kv_heads)
    ref = jax.block_until_ready(ref)

    # primary path: in-kernel causal mask, causal kv-block skipping
    out = trained_attention_forward(x, None, prep, n_heads=n_heads,
                                    n_kv_heads=n_kv_heads, causal=True)
    out = jax.block_until_ready(out)
    if not np.allclose(np.asarray(out), np.asarray(ref), atol=3e-2, rtol=5e-2):
        err = float(np.max(np.abs(np.asarray(out) - np.asarray(ref))))
        raise AssertionError(f"causal path does not match reference (max abs err {err:.4e})")

    # fallback path: explicit additive mask streamed into the kernel (arbitrary masks)
    out_m = trained_attention_forward(x, mask, prep, n_heads=n_heads,
                                      n_kv_heads=n_kv_heads, causal=False)
    out_m = jax.block_until_ready(out_m)
    if not np.allclose(np.asarray(out_m), np.asarray(ref), atol=3e-2, rtol=5e-2):
        err = float(np.max(np.abs(np.asarray(out_m) - np.asarray(ref))))
        raise AssertionError(f"masked path does not match reference (max abs err {err:.4e})")

    print("KERNEL_OK")
</pallas_src>

<mosaic_0001>
module attributes {stable_mosaic.version = 11 : i64} {
  func.func @_linear_kernel(%arg0: i32, %arg1: i32, %arg2: i32, %arg3: memref<16x512xbf16, #tpu.memory_space<vmem>>, %arg4: memref<512x512xbf16, #tpu.memory_space<vmem>>, %arg5: memref<16x512xbf16, #tpu.memory_space<vmem>>, %arg6: memref<16x512xf32, #tpu.memory_space<vmem>>) attributes {dimension_semantics = [#tpu.dimension_semantics<parallel>, #tpu.dimension_semantics<parallel>, #tpu.dimension_semantics<arbitrary>], iteration_bounds = array<i64: 1, 1, 1>, scalar_prefetch = 0 : i64, scratch_operands = 1 : i64, tpu.core_type = #tpu.core_type<tc>, window_params = [{transform_indices = @transform_0, window_bounds = array<i64: 16, 512>}, {transform_indices = @transform_1, window_bounds = array<i64: 512, 512>}, {transform_indices = @transform_2, window_bounds = array<i64: 16, 512>}]} {
    %c0_i32 = arith.constant 0 : i32
    %0 = arith.cmpi eq, %arg2, %c0_i32 : i32
    %1 = arith.extui %0 : i1 to i32
    %c0_i32_0 = arith.constant 0 : i32
    %2 = arith.cmpi ne, %1, %c0_i32_0 : i32
    scf.if %2 {
      %cst_10 = arith.constant 0.000000e+00 : f32
      %12 = vector.broadcast %cst_10 : f32 to vector<16x512xf32>
      %c0_11 = arith.constant 0 : index
      %c0_12 = arith.constant 0 : index
      %13 = vector.load %arg6[%c0_11, %c0_12] : memref<16x512xf32, #tpu.memory_space<vmem>>, vector<16x512xf32>
      tpu.vector_store %arg6[%c0_11, %c0_12], %12 {strides = array<i32>} : memref<16x512xf32, #tpu.memory_space<vmem>>, vector<16x512xf32>,
    } else {
    }
    %c0 = arith.constant 0 : index
    %c0_1 = arith.constant 0 : index
    %3 = vector.load %arg6[%c0, %c0_1] : memref<16x512xf32, #tpu.memory_space<vmem>>, vector<16x512xf32>
    %c0_2 = arith.constant 0 : index
    %c0_3 = arith.constant 0 : index
    %4 = vector.load %arg3[%c0_2, %c0_3] : memref<16x512xbf16, #tpu.memory_space<vmem>>, vector<16x512xbf16>
    %c0_4 = arith.constant 0 : index
    %c0_5 = arith.constant 0 : index
    %5 = vector.load %arg4[%c0_4, %c0_5] : memref<512x512xbf16, #tpu.memory_space<vmem>>, vector<512x512xbf16>
    %cst = arith.constant dense<0.000000e+00> : vector<16x512xf32>
    %6 = tpu.matmul %4, %5, %cst {dimension_numbers = #tpu.dot_dimension_numbers<[1], [0], [0], [1], [0, 0, 1, 1], [], []>} : vector<16x512xbf16>, vector<512x512xbf16>, vector<16x512xf32> -> vector<16x512xf32>
    %7 = arith.addf %3, %6 : vector<16x512xf32>
    %c0_6 = arith.constant 0 : index
    %c0_7 = arith.constant 0 : index
    %8 = vector.load %arg6[%c0_6, %c0_7] : memref<16x512xf32, #tpu.memory_space<vmem>>, vector<16x512xf32>
    tpu.vector_store %arg6[%c0_6, %c0_7], %7 {strides = array<i32>} : memref<16x512xf32, #tpu.memory_space<vmem>>, vector<16x512xf32>,
    %c0_i32_8 = arith.constant 0 : i32
    %9 = arith.cmpi eq, %arg2, %c0_i32_8 : i32
    %10 = arith.extui %9 : i1 to i32
    %c0_i32_9 = arith.constant 0 : i32
    %11 = arith.cmpi ne, %10, %c0_i32_9 : i32
    scf.if %11 {
      %c0_10 = arith.constant 0 : index
      %c0_11 = arith.constant 0 : index
      %12 = vector.load %arg6[%c0_10, %c0_11] : memref<16x512xf32, #tpu.memory_space<vmem>>, vector<16x512xf32>
      %13 = arith.truncf %12 : vector<16x512xf32> to vector<16x512xbf16>
      %c0_12 = arith.constant 0 : index
      %c0_13 = arith.constant 0 : index
      %14 = vector.load %arg5[%c0_12, %c0_13] : memref<16x512xbf16, #tpu.memory_space<vmem>>, vector<16x512xbf16>
      tpu.vector_store %arg5[%c0_12, %c0_13], %13 {strides = array<i32>} : memref<16x512xbf16, #tpu.memory_space<vmem>>, vector<16x512xbf16>,
    } else {
    }
    return
  }
  func.func @transform_0(%arg0: i32, %arg1: i32, %arg2: i32) -> (i32, i32) {
    %c0_i32 = arith.constant 0 : i32
    return %arg0, %arg2 : i32, i32
  }
  func.func @transform_1(%arg0: i32, %arg1: i32, %arg2: i32) -> (i32, i32) {
    %c0_i32 = arith.constant 0 : i32
    return %arg2, %arg1 : i32, i32
  }
  func.func @transform_2(%arg0: i32, %arg1: i32, %arg2: i32) -> (i32, i32) {
    %c0_i32 = arith.constant 0 : i32
    return %arg0, %arg1 : i32, i32
  }
}

</mosaic_0001>

<llo_original>
// kernel: tpu_custom_call.1
$region0: #{tpu_custom_call.1}
  #allocation0 [shape = 'u32[]', space=smem, size = 0x4, offset = 0x4, fixed_abs, tag = 'smem constant byte address 0x4 - core index']
  #allocation1 [shape = 'u32[144,128]{1,0:T(1,128)}', space=vmem, size = 0x12000, scoped, tag = 'internal scratch']
  #allocation2 [shape = 'f32[16,512]{1,0:T(8,128)}', space=vmem, size = 0x8000, scoped, tag = 'scratch operand']
  %s0 = inlined_call_operand.hbm [shape: bf16[16,512], index: 0, kind: input, shape index: {}]
  %s1 = inlined_call_operand.hbm [shape: bf16[512,512], index: 1, kind: input, shape index: {}]
  %s2 = inlined_call_operand.hbm [shape: bf16[16,512], index: 2, kind: output, shape index: {}]
  %s3 = sld [smem:[#allocation0]]
  $region34: #{tpu_custom_call.1} parent=0
    _
  %s5 = ssub.s32 1, %s3
  %s6 = scalar_select 0, %s5, %s3
  $region1: #{tpu_custom_call.1} parent=0
    #allocation3 [shape = 'u8[16384]{0}', space=vmem, size = 0x4000, scoped, tag = 'input window, operand 0, single buffered']
    #allocation4 [shape = 's32[1]{0}', space=sflag, size = 0x4, scoped, tag = 'scoped memory for tpu_custom_call.1']
    #allocation5 [shape = 's32[1]{0}', space=sflag, size = 0x4, scoped, tag = 'scoped memory for tpu_custom_call.1']
    #allocation6 [shape = 'u8[524288]{0}', space=vmem, size = 0x80000, scoped, tag = 'input window, operand 1, single buffered']
    #allocation7 [shape = 's32[1]{0}', space=sflag, size = 0x4, scoped, tag = 'scoped memory for tpu_custom_call.1']
    #allocation8 [shape = 'u8[16384]{0}', space=vmem, size = 0x4000, scoped, tag = 'output window, operand 0, single buffered']
    %7 = vsyncpa [#allocation4], 0
    %8 = vsyncpa [#allocation7], 0
    %9 = vsyncpa [#allocation5], 0
    // Predicated region
    $region2: #{tpu_custom_call.1} parent=1 // pred_check
      _
    $region3: #{tpu_custom_call.1} parent=1 // pred_check_branch
      %11 = sbr.rel (0) target = $region5
    $region4: #{tpu_custom_call.1} parent=1 // pred_region
      %s13 = ssub.s32 512, 512
      %14 = vsyncadd [#allocation4], %s13
      %s15 = sshll.u32 [#allocation3], 4
      %s16 = int_to_ptr.vmem [resolvable:$true] %s15
      %21 = dma.hbm_to_vmem [thread:$0]  %s0, 512, %s16, [#allocation4], 256, 256, 16
    $region5: #{tpu_custom_call.1} parent=1 // pred_fallthru
      _
    // Predicated region
    $region6: #{tpu_custom_call.1} parent=1 // pred_check
      _
    $region7: #{tpu_custom_call.1} parent=1 // pred_check_branch
      %23 = sbr.rel (0) target = $region9
    $region8: #{tpu_custom_call.1} parent=1 // pred_region
      %s25 = ssub.s32 16384, 16384
      %26 = vsyncadd [#allocation7], %s25
      %s27 = sshll.u32 [#allocation6], 4
      %s28 = int_to_ptr.vmem [resolvable:$true] %s27
      %33 = dma.hbm_to_vmem [thread:$0]  %s1, 16384, %s28, [#allocation7], 256, 256, 16
    $region9: #{tpu_custom_call.1} parent=1 // pred_fallthru
      _
    // Predicated region
    $region10: #{tpu_custom_call.1} parent=1 // pred_check
      _
    $region11: #{tpu_custom_call.1} parent=1 // pred_check_branch
      %35 = sbr.rel (0) target = $region13
    $region12: #{tpu_custom_call.1} parent=1 // pred_region
      %36 = dma.done [#allocation4], 512
    $region13: #{tpu_custom_call.1} parent=1 // pred_fallthru
      _
    // Predicated region
    $region14: #{tpu_custom_call.1} parent=1 // pred_check
      _
    $region15: #{tpu_custom_call.1} parent=1 // pred_check_branch
      %38 = sbr.rel (0) target = $region17
    $region16: #{tpu_custom_call.1} parent=1 // pred_region
      %39 = dma.done [#allocation7], 16384
    $region17: #{tpu_custom_call.1} parent=1 // pred_fallthru
      _
    %p40 = scmp.eq.s32.totalorder 0, 0
    // Predicated region
    $region18: #{tpu_custom_call.1} parent=1 // pred_check
      %p41 = pneg %p40
    $region19: #{tpu_custom_call.1} parent=1 // pred_check_branch
      %43 = sbr.rel (%p41) target = $region21
    $region20: #{tpu_custom_call.1} parent=1 // pred_region
      %44 = vst [vmem:[#allocation2] sm:$0xff] 0.0
      %45 = vst [vmem:[#allocation2 + $0x8] sm:$0xff] 0.0
      %46 = vst [vmem:[#allocation2 + $0x10] sm:$0xff] 0.0
      %47 = vst [vmem:[#allocation2 + $0x18] sm:$0xff] 0.0
      %48 = vst [vmem:[#allocation2 + $0x20] sm:$0xff] 0.0
      %49 = vst [vmem:[#allocation2 + $0x28] sm:$0xff] 0.0
      %50 = vst [vmem:[#allocation2 + $0x30] sm:$0xff] 0.0
      %51 = vst [vmem:[#allocation2 + $0x38] sm:$0xff] 0.0
    $region21: #{tpu_custom_call.1} parent=1 // pred_fallthru
      _
    %v52 = vld [vmem:[#allocation2] sm:$0xff]
    %v53 = vld [vmem:[#allocation2 + $0x8] sm:$0xff]
    %v54 = vld [vmem:[#allocation2 + $0x10] sm:$0xff]
    %v55 = vld [vmem:[#allocation2 + $0x18] sm:$0xff]
    %v56 = vld [vmem:[#allocation2 + $0x20] sm:$0xff]
    %v57 = vld [vmem:[#allocation2 + $0x28] sm:$0xff]
    %v58 = vld [vmem:[#allocation2 + $0x30] sm:$0xff]
    %v59 = vld [vmem:[#allocation2 + $0x38] sm:$0xff]
    %v60 = vld [vmem:[#allocation3] sm:$0xff]
    %v61 = vld [vmem:[#allocation3 + $0x8] sm:$0xff]
    %v62 = vld [vmem:[#allocation3 + $0x10] sm:$0xff]
    %v63 = vld [vmem:[#allocation3 + $0x18] sm:$0xff]
    %v64 = vld [vmem:[#allocation6] sm:$0xff]
    %v65 = vld [vmem:[#allocation6 + $0x8] sm:$0xff]
    %v66 = vld [vmem:[#allocation6 + $0x10] sm:$0xff]
    %v67 = vld [vmem:[#allocation6 + $0x18] sm:$0xff]
    %v68 = vld [vmem:[#allocation6 + $0x20] sm:$0xff]
    %v69 = vld [vmem:[#allocation6 + $0x28] sm:$0xff]
    %v70 = vld [vmem:[#allocation6 + $0x30] sm:$0xff]
    %v71 = vld [vmem:[#allocation6 + $0x38] sm:$0xff]
    %v72 = vld [vmem:[#allocation6 + $0x40] sm:$0xff]
    %v73 = vld [vmem:[#allocation6 + $0x48] sm:$0xff]
    %v74 = vld [vmem:[#allocation6 + $0x50] sm:$0xff]
    %v75 = vld [vmem:[#allocation6 + $0x58] sm:$0xff]
    %v76 = vld [vmem:[#allocation6 + $0x60] sm:$0xff]
    %v77 = vld [vmem:[#allocation6 + $0x68] sm:$0xff]
    %v78 = vld [vmem:[#allocation6 + $0x70] sm:$0xff]
    %v79 = vld [vmem:[#allocation6 + $0x78] sm:$0xff]
    %v80 = vld [vmem:[#allocation6 + $0x80] sm:$0xff]
    %v81 = vld [vmem:[#allocation6 + $0x88] sm:$0xff]
    %v82 = vld [vmem:[#allocation6 + $0x90] sm:$0xff]
    %v83 = vld [vmem:[#allocation6 + $0x98] sm:$0xff]
    %v84 = vld [vmem:[#allocation6 + $0xa0] sm:$0xff]
    %v85 = vld [vmem:[#allocation6 + $0xa8] sm:$0xff]
    %v86 = vld [vmem:[#allocation6 + $0xb0] sm:$0xff]
    %v87 = vld [vmem:[#allocation6 + $0xb8] sm:$0xff]
    %v88 = vld [vmem:[#allocation6 + $0xc0] sm:$0xff]
    %v89 = vld [vmem:[#allocation6 + $0xc8] sm:$0xff]
    %v90 = vld [vmem:[#allocation6 + $0xd0] sm:$0xff]
    %v91 = vld [vmem:[#allocation6 + $0xd8] sm:$0xff]
    %v92 = vld [vmem:[#allocation6 + $0xe0] sm:$0xff]
    %v93 = vld [vmem:[#allocation6 + $0xe8] sm:$0xff]
    %v94 = vld [vmem:[#allocation6 + $0xf0] sm:$0xff]
    %v95 = vld [vmem:[#allocation6 + $0xf8] sm:$0xff]
    %v96 = vld [vmem:[#allocation6 + $0x100] sm:$0xff]
    %v97 = vld [vmem:[#allocation6 + $0x108] sm:$0xff]
    %v98 = vld [vmem:[#allocation6 + $0x110] sm:$0xff]
    %v99 = vld [vmem:[#allocation6 + $0x118] sm:$0xff]
    %v100 = vld [vmem:[#allocation6 + $0x120] sm:$0xff]
    %v101 = vld [vmem:[#allocation6 + $0x128] sm:$0xff]
    %v102 = vld [vmem:[#allocation6 + $0x130] sm:$0xff]
    %v103 = vld [vmem:[#allocation6 + $0x138] sm:$0xff]
    %v104 = vld [vmem:[#allocation6 + $0x140] sm:$0xff]
    %v105 = vld [vmem:[#allocation6 + $0x148] sm:$0xff]
    %v106 = vld [vmem:[#allocation6 + $0x150] sm:$0xff]
    %v107 = vld [vmem:[#allocation6 + $0x158] sm:$0xff]
    %v108 = vld [vmem:[#allocation6 + $0x160] sm:$0xff]
    %v109 = vld [vmem:[#allocation6 + $0x168] sm:$0xff]
    %v110 = vld [vmem:[#allocation6 + $0x170] sm:$0xff]
    %v111 = vld [vmem:[#allocation6 + $0x178] sm:$0xff]
    %v112 = vld [vmem:[#allocation6 + $0x180] sm:$0xff]
    %v113 = vld [vmem:[#allocation6 + $0x188] sm:$0xff]
    %v114 = vld [vmem:[#allocation6 + $0x190] sm:$0xff]
    %v115 = vld [vmem:[#allocation6 + $0x198] sm:$0xff]
    %v116 = vld [vmem:[#allocation6 + $0x1a0] sm:$0xff]
    %v117 = vld [vmem:[#allocation6 + $0x1a8] sm:$0xff]
    %v118 = vld [vmem:[#allocation6 + $0x1b0] sm:$0xff]
    %v119 = vld [vmem:[#allocation6 + $0x1b8] sm:$0xff]
    %v120 = vld [vmem:[#allocation6 + $0x1c0] sm:$0xff]
    %v121 = vld [vmem:[#allocation6 + $0x1c8] sm:$0xff]
    %v122 = vld [vmem:[#allocation6 + $0x1d0] sm:$0xff]
    %v123 = vld [vmem:[#allocation6 + $0x1d8] sm:$0xff]
    %v124 = vld [vmem:[#allocation6 + $0x1e0] sm:$0xff]
    %v125 = vld [vmem:[#allocation6 + $0x1e8] sm:$0xff]
    %v126 = vld [vmem:[#allocation6 + $0x1f0] sm:$0xff]
    %v127 = vld [vmem:[#allocation6 + $0x1f8] sm:$0xff]
    %v128 = vld [vmem:[#allocation6 + $0x200] sm:$0xff]
    %v129 = vld [vmem:[#allocation6 + $0x208] sm:$0xff]
    %v130 = vld [vmem:[#allocation6 + $0x210] sm:$0xff]
    %v131 = vld [vmem:[#allocation6 + $0x218] sm:$0xff]
    %v132 = vld [vmem:[#allocation6 + $0x220] sm:$0xff]
    %v133 = vld [vmem:[#allocation6 + $0x228] sm:$0xff]
    %v134 = vld [vmem:[#allocation6 + $0x230] sm:$0xff]
    %v135 = vld [vmem:[#allocation6 + $0x238] sm:$0xff]
    %v136 = vld [vmem:[#allocation6 + $0x240] sm:$0xff]
    %v137 = vld [vmem:[#allocation6 + $0x248] sm:$0xff]
    %v138 = vld [vmem:[#allocation6 + $0x250] sm:$0xff]
    %v139 = vld [vmem:[#allocation6 + $0x258] sm:$0xff]
    %v140 = vld [vmem:[#allocation6 + $0x260] sm:$0xff]
    %v141 = vld [vmem:[#allocation6 + $0x268] sm:$0xff]
    %v142 = vld [vmem:[#allocation6 + $0x270] sm:$0xff]
    %v143 = vld [vmem:[#allocation6 + $0x278] sm:$0xff]
    %v144 = vld [vmem:[#allocation6 + $0x280] sm:$0xff]
    %v145 = vld [vmem:[#allocation6 + $0x288] sm:$0xff]
    %v146 = vld [vmem:[#allocation6 + $0x290] sm:$0xff]
    %v147 = vld [vmem:[#allocation6 + $0x298] sm:$0xff]
    %v148 = vld [vmem:[#allocation6 + $0x2a0] sm:$0xff]
    %v149 = vld [vmem:[#allocation6 + $0x2a8] sm:$0xff]
    %v150 = vld [vmem:[#allocation6 + $0x2b0] sm:$0xff]
    %v151 = vld [vmem:[#allocation6 + $0x2b8] sm:$0xff]
    %v152 = vld [vmem:[#allocation6 + $0x2c0] sm:$0xff]
    %v153 = vld [vmem:[#allocation6 + $0x2c8] sm:$0xff]
    %v154 = vld [vmem:[#allocation6 + $0x2d0] sm:$0xff]
    %v155 = vld [vmem:[#allocation6 + $0x2d8] sm:$0xff]
    %v156 = vld [vmem:[#allocation6 + $0x2e0] sm:$0xff]
    %v157 = vld [vmem:[#allocation6 + $0x2e8] sm:$0xff]
    %v158 = vld [vmem:[#allocation6 + $0x2f0] sm:$0xff]
    %v159 = vld [vmem:[#allocation6 + $0x2f8] sm:$0xff]
    %v160 = vld [vmem:[#allocation6 + $0x300] sm:$0xff]
    %v161 = vld [vmem:[#allocation6 + $0x308] sm:$0xff]
    %v162 = vld [vmem:[#allocation6 + $0x310] sm:$0xff]
    %v163 = vld [vmem:[#allocation6 + $0x318] sm:$0xff]
    %v164 = vld [vmem:[#allocation6 + $0x320] sm:$0xff]
    %v165 = vld [vmem:[#allocation6 + $0x328] sm:$0xff]
    %v166 = vld [vmem:[#allocation6 + $0x330] sm:$0xff]
    %v167 = vld [vmem:[#allocation6 + $0x338] sm:$0xff]
    %v168 = vld [vmem:[#allocation6 + $0x340] sm:$0xff]
    %v169 = vld [vmem:[#allocation6 + $0x348] sm:$0xff]
    %v170 = vld [vmem:[#allocation6 + $0x350] sm:$0xff]
    %v171 = vld [vmem:[#allocation6 + $0x358] sm:$0xff]
    %v172 = vld [vmem:[#allocation6 + $0x360] sm:$0xff]
    %v173 = vld [vmem:[#allocation6 + $0x368] sm:$0xff]
    %v174 = vld [vmem:[#allocation6 + $0x370] sm:$0xff]
    %v175 = vld [vmem:[#allocation6 + $0x378] sm:$0xff]
    %v176 = vld [vmem:[#allocation6 + $0x380] sm:$0xff]
    %v177 = vld [vmem:[#allocation6 + $0x388] sm:$0xff]
    %v178 = vld [vmem:[#allocation6 + $0x390] sm:$0xff]
    %v179 = vld [vmem:[#allocation6 + $0x398] sm:$0xff]
    %v180 = vld [vmem:[#allocation6 + $0x3a0] sm:$0xff]
    %v181 = vld [vmem:[#allocation6 + $0x3a8] sm:$0xff]
    %v182 = vld [vmem:[#allocation6 + $0x3b0] sm:$0xff]
    %v183 = vld [vmem:[#allocation6 + $0x3b8] sm:$0xff]
    %v184 = vld [vmem:[#allocation6 + $0x3c0] sm:$0xff]
    %v185 = vld [vmem:[#allocation6 + $0x3c8] sm:$0xff]
    %v186 = vld [vmem:[#allocation6 + $0x3d0] sm:$0xff]
    %v187 = vld [vmem:[#allocation6 + $0x3d8] sm:$0xff]
    %v188 = vld [vmem:[#allocation6 + $0x3e0] sm:$0xff]
    %v189 = vld [vmem:[#allocation6 + $0x3e8] sm:$0xff]
    %v190 = vld [vmem:[#allocation6 + $0x3f0] sm:$0xff]
    %v191 = vld [vmem:[#allocation6 + $0x3f8] sm:$0xff]
    %v196 = vunpack.c.l.b16 %v60
    %v197 = vunpack.c.h.b16 %v60
    %v198 = vunpack.c.l.b16 %v61
    %v199 = vunpack.c.h.b16 %v61
    %v200 = vunpack.c.l.b16 %v62
    %v201 = vunpack.c.h.b16 %v62
    %v202 = vunpack.c.l.b16 %v63
    %v203 = vunpack.c.h.b16 %v63
    %v204 = vpack.c.b16 %v200, %v196
    %v205 = vpack.c.b16 %v201, %v197
    %v206 = vpack.c.b16 %v202, %v198
    %v207 = vpack.c.b16 %v203, %v199
    %v340 = vunpack.c.l.b16 %v64
    %v341 = vunpack.c.h.b16 %v64
    %v342 = vunpack.c.l.b16 %v65
    %v343 = vunpack.c.h.b16 %v65
    %v344 = vunpack.c.l.b16 %v66
    %v345 = vunpack.c.h.b16 %v66
    %v346 = vunpack.c.l.b16 %v67
    %v347 = vunpack.c.h.b16 %v67
    %v348 = vunpack.c.l.b16 %v68
    %v349 = vunpack.c.h.b16 %v68
    %v350 = vunpack.c.l.b16 %v69
    %v351 = vunpack.c.h.b16 %v69
    %v352 = vunpack.c.l.b16 %v70
    %v353 = vunpack.c.h.b16 %v70
    %v354 = vunpack.c.l.b16 %v71
    %v355 = vunpack.c.h.b16 %v71
    %v356 = vunpack.c.l.b16 %v72
    %v357 = vunpack.c.h.b16 %v72
    %v358 = vunpack.c.l.b16 %v73
    %v359 = vunpack.c.h.b16 %v73
    %v360 = vunpack.c.l.b16 %v74
    %v361 = vunpack.c.h.b16 %v74
    %v362 = vunpack.c.l.b16 %v75
    %v363 = vunpack.c.h.b16 %v75
    %v364 = vunpack.c.l.b16 %v76
    %v365 = vunpack.c.h.b16 %v76
    %v366 = vunpack.c.l.b16 %v77
    %v367 = vunpack.c.h.b16 %v77
    %v368 = vunpack.c.l.b16 %v78
    %v369 = vunpack.c.h.b16 %v78
    %v370 = vunpack.c.l.b16 %v79
    %v371 = vunpack.c.h.b16 %v79
    %v372 = vunpack.c.l.b16 %v80
    %v373 = vunpack.c.h.b16 %v80
    %v374 = vunpack.c.l.b16 %v81
    %v375 = vunpack.c.h.b16 %v81
    %v376 = vunpack.c.l.b16 %v82
    %v377 = vunpack.c.h.b16 %v82
    %v378 = vunpack.c.l.b16 %v83
    %v379 = vunpack.c.h.b16 %v83
    %v380 = vunpack.c.l.b16 %v84
    %v381 = vunpack.c.h.b16 %v84
    %v382 = vunpack.c.l.b16 %v85
    %v383 = vunpack.c.h.b16 %v85
    %v384 = vunpack.c.l.b16 %v86
    %v385 = vunpack.c.h.b16 %v86
    %v386 = vunpack.c.l.b16 %v87
    %v387 = vunpack.c.h.b16 %v87
    %v388 = vunpack.c.l.b16 %v88
    %v389 = vunpack.c.h.b16 %v88
    %v390 = vunpack.c.l.b16 %v89
    %v391 = vunpack.c.h.b16 %v89
    %v392 = vunpack.c.l.b16 %v90
    %v393 = vunpack.c.h.b16 %v90
    %v394 = vunpack.c.l.b16 %v91
    %v395 = vunpack.c.h.b16 %v91
    %v396 = vunpack.c.l.b16 %v92
    %v397 = vunpack.c.h.b16 %v92
    %v398 = vunpack.c.l.b16 %v93
    %v399 = vunpack.c.h.b16 %v93
    %v400 = vunpack.c.l.b16 %v94
    %v401 = vunpack.c.h.b16 %v94
    %v402 = vunpack.c.l.b16 %v95
    %v403 = vunpack.c.h.b16 %v95
    %v404 = vunpack.c.l.b16 %v96
    %v405 = vunpack.c.h.b16 %v96
    %v406 = vunpack.c.l.b16 %v97
    %v407 = vunpack.c.h.b16 %v97
    %v408 = vunpack.c.l.b16 %v98
    %v409 = vunpack.c.h.b16 %v98
    %v410 = vunpack.c.l.b16 %v99
    %v411 = vunpack.c.h.b16 %v99
    %v412 = vunpack.c.l.b16 %v100
    %v413 = vunpack.c.h.b16 %v100
    %v414 = vunpack.c.l.b16 %v101
    %v415 = vunpack.c.h.b16 %v101
    %v416 = vunpack.c.l.b16 %v102
    %v417 = vunpack.c.h.b16 %v102
    %v418 = vunpack.c.l.b16 %v103
    %v419 = vunpack.c.h.b16 %v103
    %v420 = vunpack.c.l.b16 %v104
    %v421 = vunpack.c.h.b16 %v104
    %v422 = vunpack.c.l.b16 %v105
    %v423 = vunpack.c.h.b16 %v105
    %v424 = vunpack.c.l.b16 %v106
    %v425 = vunpack.c.h.b16 %v106
    %v426 = vunpack.c.l.b16 %v107
    %v427 = vunpack.c.h.b16 %v107
    %v428 = vunpack.c.l.b16 %v108
    %v429 = vunpack.c.h.b16 %v108
    %v430 = vunpack.c.l.b16 %v109
    %v431 = vunpack.c.h.b16 %v109
    %v432 = vunpack.c.l.b16 %v110
    %v433 = vunpack.c.h.b16 %v110
    %v434 = vunpack.c.l.b16 %v111
    %v435 = vunpack.c.h.b16 %v111
    %v436 = vunpack.c.l.b16 %v112
    %v437 = vunpack.c.h.b16 %v112
    %v438 = vunpack.c.l.b16 %v113
    %v439 = vunpack.c.h.b16 %v113
    %v440 = vunpack.c.l.b16 %v114
    %v441 = vunpack.c.h.b16 %v114
    %v442 = vunpack.c.l.b16 %v115
    %v443 = vunpack.c.h.b16 %v115
    %v444 = vunpack.c.l.b16 %v116
    %v445 = vunpack.c.h.b16 %v116
    %v446 = vunpack.c.l.b16 %v117
    %v447 = vunpack.c.h.b16 %v117
    %v448 = vunpack.c.l.b16 %v118
    %v449 = vunpack.c.h.b16 %v118
    %v450 = vunpack.c.l.b16 %v119
    %v451 = vunpack.c.h.b16 %v119
    %v452 = vunpack.c.l.b16 %v120
    %v453 = vunpack.c.h.b16 %v120
    %v454 = vunpack.c.l.b16 %v121
    %v455 = vunpack.c.h.b16 %v121
    %v456 = vunpack.c.l.b16 %v122
    %v457 = vunpack.c.h.b16 %v122
    %v458 = vunpack.c.l.b16 %v123
    %v459 = vunpack.c.h.b16 %v123
    %v460 = vunpack.c.l.b16 %v124
    %v461 = vunpack.c.h.b16 %v124
    %v462 = vunpack.c.l.b16 %v125
    %v463 = vunpack.c.h.b16 %v125
    %v464 = vunpack.c.l.b16 %v126
    %v465 = vunpack.c.h.b16 %v126
    %v466 = vunpack.c.l.b16 %v127
    %v467 = vunpack.c.h.b16 %v127
    %v468 = vunpack.c.l.b16 %v128
    %v469 = vunpack.c.h.b16 %v128
    %v470 = vunpack.c.l.b16 %v129
    %v471 = vunpack.c.h.b16 %v129
    %v472 = vunpack.c.l.b16 %v130
    %v473 = vunpack.c.h.b16 %v130
    %v474 = vunpack.c.l.b16 %v131
    %v475 = vunpack.c.h.b16 %v131
    %v476 = vunpack.c.l.b16 %v132
    %v477 = vunpack.c.h.b16 %v132
    %v478 = vunpack.c.l.b16 %v133
    %v479 = vunpack.c.h.b16 %v133
    %v480 = vunpack.c.l.b16 %v134
    %v481 = vunpack.c.h.b16 %v134
    %v482 = vunpack.c.l.b16 %v135
    %v483 = vunpack.c.h.b16 %v135
    %v484 = vunpack.c.l.b16 %v136
    %v485 = vunpack.c.h.b16 %v136
    %v486 = vunpack.c.l.b16 %v137
    %v487 = vunpack.c.h.b16 %v137
    %v488 = vunpack.c.l.b16 %v138
    %v489 = vunpack.c.h.b16 %v138
    %v490 = vunpack.c.l.b16 %v139
    %v491 = vunpack.c.h.b16 %v139
    %v492 = vunpack.c.l.b16 %v140
    %v493 = vunpack.c.h.b16 %v140
    %v494 = vunpack.c.l.b16 %v141
    %v495 = vunpack.c.h.b16 %v141
    %v496 = vunpack.c.l.b16 %v142
    %v497 = vunpack.c.h.b16 %v142
    %v498 = vunpack.c.l.b16 %v143
    %v499 = vunpack.c.h.b16 %v143
    %v500 = vunpack.c.l.b16 %v144
    %v501 = vunpack.c.h.b16 %v144
    %v502 = vunpack.c.l.b16 %v145
    %v503 = vunpack.c.h.b16 %v145
    %v504 = vunpack.c.l.b16 %v146
    %v505 = vunpack.c.h.b16 %v146
    %v506 = vunpack.c.l.b16 %v147
    %v507 = vunpack.c.h.b16 %v147
    %v508 = vunpack.c.l.b16 %v148
    %v509 = vunpack.c.h.b16 %v148
    %v510 = vunpack.c.l.b16 %v149
    %v511 = vunpack.c.h.b16 %v149
    %v512 = vunpack.c.l.b16 %v150
    %v513 = vunpack.c.h.b16 %v150
    %v514 = vunpack.c.l.b16 %v151
    %v515 = vunpack.c.h.b16 %v151
    %v516 = vunpack.c.l.b16 %v152
    %v517 = vunpack.c.h.b16 %v152
    %v518 = vunpack.c.l.b16 %v153
    %v519 = vunpack.c.h.b16 %v153
    %v520 = vunpack.c.l.b16 %v154
    %v521 = vunpack.c.h.b16 %v154
    %v522 = vunpack.c.l.b16 %v155
    %v523 = vunpack.c.h.b16 %v155
    %v524 = vunpack.c.l.b16 %v156
    %v525 = vunpack.c.h.b16 %v156
    %v526 = vunpack.c.l.b16 %v157
    %v527 = vunpack.c.h.b16 %v157
    %v528 = vunpack.c.l.b16 %v158
    %v529 = vunpack.c.h.b16 %v158
    %v530 = vunpack.c.l.b16 %v159
    %v531 = vunpack.c.h.b16 %v159
    %v532 = vunpack.c.l.b16 %v160
    %v533 = vunpack.c.h.b16 %v160
    %v534 = vunpack.c.l.b16 %v161
    %v535 = vunpack.c.h.b16 %v161
    %v536 = vunpack.c.l.b16 %v162
    %v537 = vunpack.c.h.b16 %v162
    %v538 = vunpack.c.l.b16 %v163
    %v539 = vunpack.c.h.b16 %v163
    %v540 = vunpack.c.l.b16 %v164
    %v541 = vunpack.c.h.b16 %v164
    %v542 = vunpack.c.l.b16 %v165
    %v543 = vunpack.c.h.b16 %v165
    %v544 = vunpack.c.l.b16 %v166
    %v545 = vunpack.c.h.b16 %v166
    %v546 = vunpack.c.l.b16 %v167
    %v547 = vunpack.c.h.b16 %v167
    %v548 = vunpack.c.l.b16 %v168
    %v549 = vunpack.c.h.b16 %v168
    %v550 = vunpack.c.l.b16 %v169
    %v551 = vunpack.c.h.b16 %v169
    %v552 = vunpack.c.l.b16 %v170
    %v553 = vunpack.c.h.b16 %v170
    %v554 = vunpack.c.l.b16 %v171
    %v555 = vunpack.c.h.b16 %v171
    %v556 = vunpack.c.l.b16 %v172
    %v557 = vunpack.c.h.b16 %v172
    %v558 = vunpack.c.l.b16 %v173
    %v559 = vunpack.c.h.b16 %v173
    %v560 = vunpack.c.l.b16 %v174
    %v561 = vunpack.c.h.b16 %v174
    %v562 = vunpack.c.l.b16 %v175
    %v563 = vunpack.c.h.b16 %v175
    %v564 = vunpack.c.l.b16 %v176
    %v565 = vunpack.c.h.b16 %v176
    %v566 = vunpack.c.l.b16 %v177
    %v567 = vunpack.c.h.b16 %v177
    %v568 = vunpack.c.l.b16 %v178
    %v569 = vunpack.c.h.b16 %v178
    %v570 = vunpack.c.l.b16 %v179
    %v571 = vunpack.c.h.b16 %v179
    %v572 = vunpack.c.l.b16 %v180
    %v573 = vunpack.c.h.b16 %v180
    %v574 = vunpack.c.l.b16 %v181
    %v575 = vunpack.c.h.b16 %v181
    %v576 = vunpack.c.l.b16 %v182
    %v577 = vunpack.c.h.b16 %v182
    %v578 = vunpack.c.l.b16 %v183
    %v579 = vunpack.c.h.b16 %v183
    %v580 = vunpack.c.l.b16 %v184
    %v581 = vunpack.c.h.b16 %v184
    %v582 = vunpack.c.l.b16 %v185
    %v583 = vunpack.c.h.b16 %v185
    %v584 = vunpack.c.l.b16 %v186
    %v585 = vunpack.c.h.b16 %v186
    %v586 = vunpack.c.l.b16 %v187
    %v587 = vunpack.c.h.b16 %v187
    %v588 = vunpack.c.l.b16 %v188
    %v589 = vunpack.c.h.b16 %v188
    %v590 = vunpack.c.l.b16 %v189
    %v591 = vunpack.c.h.b16 %v189
    %v592 = vunpack.c.l.b16 %v190
    %v593 = vunpack.c.h.b16 %v190
    %v594 = vunpack.c.l.b16 %v191
    %v595 = vunpack.c.h.b16 %v191
    %v596 = vpack.c.b16 %v344, %v340
    %v597 = vpack.c.b16 %v345, %v341
    %v598 = vpack.c.b16 %v346, %v342
    %v599 = vpack.c.b16 %v347, %v343
    %v600 = vpack.c.b16 %v352, %v348
    %v601 = vpack.c.b16 %v353, %v349
    %v602 = vpack.c.b16 %v354, %v350
    %v603 = vpack.c.b16 %v355, %v351
    %v604 = vpack.c.b16 %v360, %v356
    %v605 = vpack.c.b16 %v361, %v357
    %v606 = vpack.c.b16 %v362, %v358
    %v607 = vpack.c.b16 %v363, %v359
    %v608 = vpack.c.b16 %v368, %v364
    %v609 = vpack.c.b16 %v369, %v365
    %v610 = vpack.c.b16 %v370, %v366
    %v611 = vpack.c.b16 %v371, %v367
    %v612 = vpack.c.b16 %v376, %v372
    %v613 = vpack.c.b16 %v377, %v373
    %v614 = vpack.c.b16 %v378, %v374
    %v615 = vpack.c.b16 %v379, %v375
    %v616 = vpack.c.b16 %v384, %v380
    %v617 = vpack.c.b16 %v385, %v381
    %v618 = vpack.c.b16 %v386, %v382
    %v619 = vpack.c.b16 %v387, %v383
    %v620 = vpack.c.b16 %v392, %v388
    %v621 = vpack.c.b16 %v393, %v389
    %v622 = vpack.c.b16 %v394, %v390
    %v623 = vpack.c.b16 %v395, %v391
    %v624 = vpack.c.b16 %v400, %v396
    %v625 = vpack.c.b16 %v401, %v397
    %v626 = vpack.c.b16 %v402, %v398
    %v627 = vpack.c.b16 %v403, %v399
    %v628 = vpack.c.b16 %v408, %v404
    %v629 = vpack.c.b16 %v409, %v405
    %v630 = vpack.c.b16 %v410, %v406
    %v631 = vpack.c.b16 %v411, %v407
    %v632 = vpack.c.b16 %v416, %v412
    %v633 = vpack.c.b16 %v417, %v413
    %v634 = vpack.c.b16 %v418, %v414
    %v635 = vpack.c.b16 %v419, %v415
    %v636 = vpack.c.b16 %v424, %v420
    %v637 = vpack.c.b16 %v425, %v421
    %v638 = vpack.c.b16 %v426, %v422
    %v639 = vpack.c.b16 %v427, %v423
    %v640 = vpack.c.b16 %v432, %v428
    %v641 = vpack.c.b16 %v433, %v429
    %v642 = vpack.c.b16 %v434, %v430
    %v643 = vpack.c.b16 %v435, %v431
    %v644 = vpack.c.b16 %v440, %v436
    %v645 = vpack.c.b16 %v441, %v437
    %v646 = vpack.c.b16 %v442, %v438
    %v647 = vpack.c.b16 %v443, %v439
    %v648 = vpack.c.b16 %v448, %v444
    %v649 = vpack.c.b16 %v449, %v445
    %v650 = vpack.c.b16 %v450, %v446
    %v651 = vpack.c.b16 %v451, %v447
    %v652 = vpack.c.b16 %v456, %v452
    %v653 = vpack.c.b16 %v457, %v453
    %v654 = vpack.c.b16 %v458, %v454
    %v655 = vpack.c.b16 %v459, %v455
    %v656 = vpack.c.b16 %v464, %v460
    %v657 = vpack.c.b16 %v465, %v461
    %v658 = vpack.c.b16 %v466, %v462
    %v659 = vpack.c.b16 %v467, %v463
    %v660 = vpack.c.b16 %v472, %v468
    %v661 = vpack.c.b16 %v473, %v469
    %v662 = vpack.c.b16 %v474, %v470
    %v663 = vpack.c.b16 %v475, %v471
    %v664 = vpack.c.b16 %v480, %v476
    %v665 = vpack.c.b16 %v481, %v477
    %v666 = vpack.c.b16 %v482, %v478
    %v667 = vpack.c.b16 %v483, %v479
    %v668 = vpack.c.b16 %v488, %v484
    %v669 = vpack.c.b16 %v489, %v485
    %v670 = vpack.c.b16 %v490, %v486
    %v671 = vpack.c.b16 %v491, %v487
    %v672 = vpack.c.b16 %v496, %v492
    %v673 = vpack.c.b16 %v497, %v493
    %v674 = vpack.c.b16 %v498, %v494
    %v675 = vpack.c.b16 %v499, %v495
    %v676 = vpack.c.b16 %v504, %v500
    %v677 = vpack.c.b16 %v505, %v501
    %v678 = vpack.c.b16 %v506, %v502
    %v679 = vpack.c.b16 %v507, %v503
    %v680 = vpack.c.b16 %v512, %v508
    %v681 = vpack.c.b16 %v513, %v509
    %v682 = vpack.c.b16 %v514, %v510
    %v683 = vpack.c.b16 %v515, %v511
    %v684 = vpack.c.b16 %v520, %v516
    %v685 = vpack.c.b16 %v521, %v517
    %v686 = vpack.c.b16 %v522, %v518
    %v687 = vpack.c.b16 %v523, %v519
    %v688 = vpack.c.b16 %v528, %v524
    %v689 = vpack.c.b16 %v529, %v525
    %v690 = vpack.c.b16 %v530, %v526
    %v691 = vpack.c.b16 %v531, %v527
    %v692 = vpack.c.b16 %v536, %v532
    %v693 = vpack.c.b16 %v537, %v533
    %v694 = vpack.c.b16 %v538, %v534
    %v695 = vpack.c.b16 %v539, %v535
    %v696 = vpack.c.b16 %v544, %v540
    %v697 = vpack.c.b16 %v545, %v541
    %v698 = vpack.c.b16 %v546, %v542
    %v699 = vpack.c.b16 %v547, %v543
    %v700 = vpack.c.b16 %v552, %v548
    %v701 = vpack.c.b16 %v553, %v549
    %v702 = vpack.c.b16 %v554, %v550
    %v703 = vpack.c.b16 %v555, %v551
    %v704 = vpack.c.b16 %v560, %v556
    %v705 = vpack.c.b16 %v561, %v557
    %v706 = vpack.c.b16 %v562, %v558
    %v707 = vpack.c.b16 %v563, %v559
    %v708 = vpack.c.b16 %v568, %v564
    %v709 = vpack.c.b16 %v569, %v565
    %v710 = vpack.c.b16 %v570, %v566
    %v711 = vpack.c.b16 %v571, %v567
    %v712 = vpack.c.b16 %v576, %v572
    %v713 = vpack.c.b16 %v577, %v573
    %v714 = vpack.c.b16 %v578, %v574
    %v715 = vpack.c.b16 %v579, %v575
    %v716 = vpack.c.b16 %v584, %v580
    %v717 = vpack.c.b16 %v585, %v581
    %v718 = vpack.c.b16 %v586, %v582
    %v719 = vpack.c.b16 %v587, %v583
    %v720 = vpack.c.b16 %v592, %v588
    %v721 = vpack.c.b16 %v593, %v589
    %v722 = vpack.c.b16 %v594, %v590
    %v723 = vpack.c.b16 %v595, %v591
    %852 = vmatprep.subr.bf16.mxu0 %v625
    %853 = vmatpush1.bf16.msra.mxu0 %v624
    %854 = vmatprep.subr.bf16.mxu0 %v621
    %855 = vmatpush1.bf16.msra.mxu0 %v620
    %856 = vmatprep.subr.bf16.mxu0 %v617
    %857 = vmatpush1.bf16.msra.mxu0 %v616
    %858 = vmatprep.subr.bf16.mxu0 %v613
    %859 = vmatpush1.bf16.msra.mxu0 %v612
    %860 = vmatprep.subr.bf16.mxu0 %v609
    %861 = vmatpush1.bf16.msra.mxu0 %v608
    %862 = vmatprep.subr.bf16.mxu0 %v605
    %863 = vmatpush1.bf16.msra.mxu0 %v604
    %864 = vmatprep.subr.bf16.mxu0 %v601
    %865 = vmatpush1.bf16.msra.mxu0 %v600
    %866 = vmatprep.subr.bf16.mxu0 %v597
    %867 = vmatpush1.bf16.msra.mxu0 %v596
    %868 = vmatprep.subr.bf16.mxu0 %v657
    %869 = vmatpush2.bf16.msra.mxu0 %v656
    %870 = vmatprep.subr.bf16.mxu0 %v653
    %871 = vmatpush2.bf16.msra.mxu0 %v652
    %872 = vmatprep.subr.bf16.mxu0 %v649
    %873 = vmatpush2.bf16.msra.mxu0 %v648
    %874 = vmatprep.subr.bf16.mxu0 %v645
    %875 = vmatpush2.bf16.msra.mxu0 %v644
    %876 = vmatprep.subr.bf16.mxu0 %v641
    %877 = vmatpush2.bf16.msra.mxu0 %v640
    %878 = vmatprep.subr.bf16.mxu0 %v637
    %879 = vmatpush2.bf16.msra.mxu0 %v636
    %880 = vmatprep.subr.bf16.mxu0 %v633
    %881 = vmatpush2.bf16.msra.mxu0 %v632
    %882 = vmatprep.subr.bf16.mxu0 %v629
    %883 = vmatpush2.bf16.msra.mxu0 %v628
    %884 = vmatprep.mubr.bf16.mxu0 %v205
    %885 = vmatmul.mubr.bf16.gmra.mxu0 %v204
    %v886 = vpop.f32.mrf.mxu0
    %v887 = vadd.f32 0.0, %v886
    %v888 = vpop.f32.mrf.mxu0
    %v889 = vadd.f32 0.0, %v888
    %v890 = vpop.f32.mrf.mxu0
    %v891 = vadd.f32 0.0, %v890
    %v892 = vpop.f32.mrf.mxu0
    %v893 = vadd.f32 0.0, %v892
    %894 = vdwg.mxu0
    %895 = vmatprep.subr.bf16.mxu0 %v689
    %896 = vmatpush1.bf16.msra.mxu0 %v688
    %897 = vmatprep.subr.bf16.mxu0 %v685
    %898 = vmatpush1.bf16.msra.mxu0 %v684
    %899 = vmatprep.subr.bf16.mxu0 %v681
    %900 = vmatpush1.bf16.msra.mxu0 %v680
    %901 = vmatprep.subr.bf16.mxu0 %v677
    %902 = vmatpush1.bf16.msra.mxu0 %v676
    %903 = vmatprep.subr.bf16.mxu0 %v673
    %904 = vmatpush1.bf16.msra.mxu0 %v672
    %905 = vmatprep.subr.bf16.mxu0 %v669
    %906 = vmatpush1.bf16.msra.mxu0 %v668
    %907 = vmatprep.subr.bf16.mxu0 %v665
    %908 = vmatpush1.bf16.msra.mxu0 %v664
    %909 = vmatprep.subr.bf16.mxu0 %v661
    %910 = vmatpush1.bf16.msra.mxu0 %v660
    %911 = vmatprep.subr.bf16.mxu0 %v721
    %912 = vmatpush2.bf16.msra.mxu0 %v720
    %913 = vmatprep.subr.bf16.mxu0 %v717
    %914 = vmatpush2.bf16.msra.mxu0 %v716
    %915 = vmatprep.subr.bf16.mxu0 %v713
    %916 = vmatpush2.bf16.msra.mxu0 %v712
    %917 = vmatprep.subr.bf16.mxu0 %v709
    %918 = vmatpush2.bf16.msra.mxu0 %v708
    %919 = vmatprep.subr.bf16.mxu0 %v705
    %920 = vmatpush2.bf16.msra.mxu0 %v704
    %921 = vmatprep.subr.bf16.mxu0 %v701
    %922 = vmatpush2.bf16.msra.mxu0 %v700
    %923 = vmatprep.subr.bf16.mxu0 %v697
    %924 = vmatpush2.bf16.msra.mxu0 %v696
    %925 = vmatprep.subr.bf16.mxu0 %v693
    %926 = vmatpush2.bf16.msra.mxu0 %v692
    %927 = vmatprep.mubr.bf16.mxu0 %v207
    %928 = vmatmul.mubr.bf16.gmra.mxu0 %v206
    %v929 = vpop.f32.mrf.mxu0
    %v930 = vadd.f32 %v887, %v929
    %v931 = vpop.f32.mrf.mxu0
    %v932 = vadd.f32 %v889, %v931
    %v933 = vpop.f32.mrf.mxu0
    %v934 = vadd.f32 %v891, %v933
    %v935 = vpop.f32.mrf.mxu0
    %v936 = vadd.f32 %v893, %v935
    %937 = vdwg.mxu0
    %938 = vmatprep.subr.bf16.mxu0 %v627
    %939 = vmatpush1.bf16.msra.mxu0 %v626
    %940 = vmatprep.subr.bf16.mxu0 %v623
    %941 = vmatpush1.bf16.msra.mxu0 %v622
    %942 = vmatprep.subr.bf16.mxu0 %v619
    %943 = vmatpush1.bf16.msra.mxu0 %v618
    %944 = vmatprep.subr.bf16.mxu0 %v615
    %945 = vmatpush1.bf16.msra.mxu0 %v614
    %946 = vmatprep.subr.bf16.mxu0 %v611
    %947 = vmatpush1.bf16.msra.mxu0 %v610
    %948 = vmatprep.subr.bf16.mxu0 %v607
    %949 = vmatpush1.bf16.msra.mxu0 %v606
    %950 = vmatprep.subr.bf16.mxu0 %v603
    %951 = vmatpush1.bf16.msra.mxu0 %v602
    %952 = vmatprep.subr.bf16.mxu0 %v599
    %953 = vmatpush1.bf16.msra.mxu0 %v598
    %954 = vmatprep.subr.bf16.mxu0 %v659
    %955 = vmatpush2.bf16.msra.mxu0 %v658
    %956 = vmatprep.subr.bf16.mxu0 %v655
    %957 = vmatpush2.bf16.msra.mxu0 %v654
    %958 = vmatprep.subr.bf16.mxu0 %v651
    %959 = vmatpush2.bf16.msra.mxu0 %v650
    %960 = vmatprep.subr.bf16.mxu0 %v647
    %961 = vmatpush2.bf16.msra.mxu0 %v646
    %962 = vmatprep.subr.bf16.mxu0 %v643
    %963 = vmatpush2.bf16.msra.mxu0 %v642
    %964 = vmatprep.subr.bf16.mxu0 %v639
    %965 = vmatpush2.bf16.msra.mxu0 %v638
    %966 = vmatprep.subr.bf16.mxu0 %v635
    %967 = vmatpush2.bf16.msra.mxu0 %v634
    %968 = vmatprep.subr.bf16.mxu0 %v631
    %969 = vmatpush2.bf16.msra.mxu0 %v630
    %970 = vmatprep.mubr.bf16.mxu0 %v205
    %971 = vmatmul.mubr.bf16.gmra.mxu0 %v204
    %v972 = vpop.f32.mrf.mxu0
    %v973 = vadd.f32 0.0, %v972
    %v974 = vpop.f32.mrf.mxu0
    %v975 = vadd.f32 0.0, %v974
    %v976 = vpop.f32.mrf.mxu0
    %v977 = vadd.f32 0.0, %v976
    %v978 = vpop.f32.mrf.mxu0
    %v979 = vadd.f32 0.0, %v978
    %980 = vdwg.mxu0
    %981 = vmatprep.subr.bf16.mxu0 %v691
    %982 = vmatpush1.bf16.msra.mxu0 %v690
    %983 = vmatprep.subr.bf16.mxu0 %v687
    %984 = vmatpush1.bf16.msra.mxu0 %v686
    %985 = vmatprep.subr.bf16.mxu0 %v683
    %986 = vmatpush1.bf16.msra.mxu0 %v682
    %987 = vmatprep.subr.bf16.mxu0 %v679
    %988 = vmatpush1.bf16.msra.mxu0 %v678
    %989 = vmatprep.subr.bf16.mxu0 %v675
    %990 = vmatpush1.bf16.msra.mxu0 %v674
    %991 = vmatprep.subr.bf16.mxu0 %v671
    %992 = vmatpush1.bf16.msra.mxu0 %v670
    %993 = vmatprep.subr.bf16.mxu0 %v667
    %994 = vmatpush1.bf16.msra.mxu0 %v666
    %995 = vmatprep.subr.bf16.mxu0 %v663
    %996 = vmatpush1.bf16.msra.mxu0 %v662
    %997 = vmatprep.subr.bf16.mxu0 %v723
    %998 = vmatpush2.bf16.msra.mxu0 %v722
    %999 = vmatprep.subr.bf16.mxu0 %v719
    %1000 = vmatpush2.bf16.msra.mxu0 %v718
    %1001 = vmatprep.subr.bf16.mxu0 %v715
    %1002 = vmatpush2.bf16.msra.mxu0 %v714
    %1003 = vmatprep.subr.bf16.mxu0 %v711
    %1004 = vmatpush2.bf16.msra.mxu0 %v710
    %1005 = vmatprep.subr.bf16.mxu0 %v707
    %1006 = vmatpush2.bf16.msra.mxu0 %v706
    %1007 = vmatprep.subr.bf16.mxu0 %v703
    %1008 = vmatpush2.bf16.msra.mxu0 %v702
    %1009 = vmatprep.subr.bf16.mxu0 %v699
    %1010 = vmatpush2.bf16.msra.mxu0 %v698
    %1011 = vmatprep.subr.bf16.mxu0 %v695
    %1012 = vmatpush2.bf16.msra.mxu0 %v694
    %1013 = vmatprep.mubr.bf16.mxu0 %v207
    %1014 = vmatmul.mubr.bf16.gmra.mxu0 %v206
    %v1015 = vpop.f32.mrf.mxu0
    %v1016 = vadd.f32 %v973, %v1015
    %v1017 = vpop.f32.mrf.mxu0
    %v1018 = vadd.f32 %v975, %v1017
    %v1019 = vpop.f32.mrf.mxu0
    %v1020 = vadd.f32 %v977, %v1019
    %v1021 = vpop.f32.mrf.mxu0
    %v1022 = vadd.f32 %v979, %v1021
    %1023 = vdwg.mxu0
    %v1024 = vadd.f32 %v52, %v930
    %v1025 = vadd.f32 %v53, %v932
    %v1026 = vadd.f32 %v54, %v1016
    %v1027 = vadd.f32 %v55, %v1018
    %v1028 = vadd.f32 %v56, %v934
    %v1029 = vadd.f32 %v57, %v936
    %v1030 = vadd.f32 %v58, %v1020
    %v1031 = vadd.f32 %v59, %v1022
    %1032 = vst [vmem:[#allocation2] sm:$0xff] %v1024
    %1033 = vst [vmem:[#allocation2 + $0x8] sm:$0xff] %v1025
    %1034 = vst [vmem:[#allocation2 + $0x10] sm:$0xff] %v1026
    %1035 = vst [vmem:[#allocation2 + $0x18] sm:$0xff] %v1027
    %1036 = vst [vmem:[#allocation2 + $0x20] sm:$0xff] %v1028
    %1037 = vst [vmem:[#allocation2 + $0x28] sm:$0xff] %v1029
    %1038 = vst [vmem:[#allocation2 + $0x30] sm:$0xff] %v1030
    %1039 = vst [vmem:[#allocation2 + $0x38] sm:$0xff] %v1031
    // Predicated region
    $region22: #{tpu_custom_call.1} parent=1 // pred_check
      %p1040 = pneg %p40
    $region23: #{tpu_custom_call.1} parent=1 // pred_check_branch
      %1042 = sbr.rel (%p1040) target = $region25
    $region24: #{tpu_custom_call.1} parent=1 // pred_region
      %v1043 = vld [vmem:[#allocation2] sm:$0xff]
      %v1044 = vld [vmem:[#allocation2 + $0x8] sm:$0xff]
      %v1045 = vld [vmem:[#allocation2 + $0x10] sm:$0xff]
      %v1046 = vld [vmem:[#allocation2 + $0x18] sm:$0xff]
      %v1047 = vld [vmem:[#allocation2 + $0x20] sm:$0xff]
      %v1048 = vld [vmem:[#allocation2 + $0x28] sm:$0xff]
      %v1049 = vld [vmem:[#allocation2 + $0x30] sm:$0xff]
      %v1050 = vld [vmem:[#allocation2 + $0x38] sm:$0xff]
      %v1051 = vpack.c.bf16 %v1047, %v1043
      %v1052 = vpack.c.bf16 %v1048, %v1044
      %v1053 = vpack.c.bf16 %v1049, %v1045
      %v1054 = vpack.c.bf16 %v1050, %v1046
      %v1059 = vunpack.c.l.b16 %v1051
      %v1060 = vunpack.c.l.b16 %v1052
      %v1061 = vunpack.c.l.b16 %v1053
      %v1062 = vunpack.c.l.b16 %v1054
      %v1063 = vunpack.c.h.b16 %v1051
      %v1064 = vunpack.c.h.b16 %v1052
      %v1065 = vunpack.c.h.b16 %v1053
      %v1066 = vunpack.c.h.b16 %v1054
      %v1067 = vpack.c.b16 %v1060, %v1059
      %v1068 = vpack.c.b16 %v1062, %v1061
      %v1069 = vpack.c.b16 %v1064, %v1063
      %v1070 = vpack.c.b16 %v1066, %v1065
      %1075 = vst [vmem:[#allocation8] sm:$0xff] %v1067
      %1076 = vst [vmem:[#allocation8 + $0x8] sm:$0xff] %v1068
      %1077 = vst [vmem:[#allocation8 + $0x10] sm:$0xff] %v1069
      %1078 = vst [vmem:[#allocation8 + $0x18] sm:$0xff] %v1070
    $region25: #{tpu_custom_call.1} parent=1 // pred_fallthru
      _
    // Predicated region
    $region26: #{tpu_custom_call.1} parent=1 // pred_check
      _
    $region27: #{tpu_custom_call.1} parent=1 // pred_check_branch
      %1080 = sbr.rel (0) target = $region29
    $region28: #{tpu_custom_call.1} parent=1 // pred_region
      %s1082 = ssub.s32 512, 512
      %1083 = vsyncadd [#allocation5], %s1082
      %s1084 = sshll.u32 [#allocation8], 4
      %s1085 = int_to_ptr.vmem [resolvable:$true] %s1084
      %1090 = dma.vmem_to_hbm [thread:$0]  %s1085, 512, %s2, [#allocation5], 256, 256, 16
    $region29: #{tpu_custom_call.1} parent=1 // pred_fallthru
      _
    // Predicated region
    $region30: #{tpu_custom_call.1} parent=1 // pred_check
      _
    $region31: #{tpu_custom_call.1} parent=1 // pred_check_branch
      %1092 = sbr.rel (0) target = $region33
    $region32: #{tpu_custom_call.1} parent=1 // pred_region
      %1093 = dma.done [#allocation5], 512
    $region33: #{tpu_custom_call.1} parent=1 // pred_fallthru
      _
    %1094 = vsyncpa [#allocation4], 1
    %1095 = vsyncpa [#allocation7], 1
    %1096 = vsyncpa [#allocation5], 1

</llo_original>
